<compile_context>
chip_gen: v7x
topology: tpu7x:2x2x1
jax: 0.10.0
libtpu: 0.0.40
codegen_flags: <defaults>
</compile_context>

<pallas_src>
import jax
import jax.numpy as jnp
from jax.experimental import pallas as pl
from jax.experimental.pallas import tpu as pltpu

IN_FEATURES = 5184
HIDDEN = 128
OUT_FEATURES = 1

_HP = jax.lax.Precision.HIGHEST  # wrapper-side (XLA) fold / reference precision


def linear_model_kernel(x_ref, w_ref, b_ref, o_ref):
    # Folded single layer:  out = sum(x * w_eff_row, axis=-1) + b_eff.
    # Pure f32 VPU multiply + lane/sublane reduce; per-chunk accumulation keeps
    # vreg pressure bounded and the whole step hidden under the x HBM DMA.
    x = x_ref[...]                       # (TB, 5184)
    w = w_ref[...]                       # (1, 5184), broadcast over the batch rows
    acc = jnp.sum(x * w, axis=-1, keepdims=True)   # (TB, 1)
    o_ref[...] = (acc + b_ref[...]).astype(o_ref.dtype)


def _round_up(n, m):
    return ((n + m - 1) // m) * m


def _pick_batch_tile(batch, tb_max):
    # >=2 tiles when possible (feeds both v7x TensorCores via the "parallel" axis)
    # and near-equal tiles so tail padding (wasted DMA) stays small.
    n_tiles = max(2, pl.cdiv(batch, tb_max))
    return max(8, _round_up(pl.cdiv(batch, n_tiles), 8))


def linear_model(x, w1_t, b1, w2_row, b2, *, tb_max=1024):
    """x: (B, 5184); w1_t: (5184, 128); b1: (1, 128); w2_row: (1, 128); b2: (1, 1)."""
    B = x.shape[0]

    # ---- Algebraic fold of the two linear layers (no nonlinearity between them) ----
    # y = (x @ W1^T + b1) @ W2^T + b2 = x @ (W1^T W2^T) + (b1 W2^T + b2)
    w_eff_row = jnp.dot(w2_row, w1_t.T, precision=_HP)          # (1, 5184)
    b_eff = jnp.dot(b1, w2_row.T, precision=_HP) + b2           # (1, 1)

    # ---- Batch tiling ----
    TB = _pick_batch_tile(B, tb_max)
    B_pad = _round_up(B, TB)
    if B_pad != B:
        # Zero-pad tail rows; they produce finite garbage that is sliced off below.
        x = jnp.pad(x, ((0, B_pad - B), (0, 0)))
    grid = (B_pad // TB,)

    # Double-buffered x tile dominates VMEM; cap at 56 MiB (< v7x 64 MiB physical).
    vmem_limit = min(56 << 20, max(16 << 20, 2 * TB * IN_FEATURES * 4 + (2 << 20)))

    out = pl.pallas_call(
        linear_model_kernel,
        out_shape=jax.ShapeDtypeStruct((B_pad, OUT_FEATURES), jnp.float32),
        grid_spec=pl.GridSpec(
            grid=grid,
            in_specs=[
                # x: streamed per batch tile (double-buffered by the Pallas pipeline).
                pl.BlockSpec((TB, IN_FEATURES), lambda i: (i, 0)),
                # Folded weight row / bias: constant index_map -> VMEM-resident,
                # loaded once (tiny: ~20 KiB + 4 B).
                pl.BlockSpec((1, IN_FEATURES), lambda i: (0, 0)),
                pl.BlockSpec((1, OUT_FEATURES), lambda i: (0, 0)),
            ],
            out_specs=pl.BlockSpec((TB, OUT_FEATURES), lambda i: (i, 0)),
        ),
        compiler_params=pltpu.CompilerParams(
            # Batch tiles are independent -> parallel (shards across both TCs on v7x).
            dimension_semantics=("parallel",),
            vmem_limit_bytes=vmem_limit,
        ),
    )(x, w_eff_row, b_eff)
    return out[:B]


def init_params(key):
    """Deterministic init mirroring nn.Linear shapes (W1 stored transposed for x @ W1)."""
    k1, k2, k3, k4 = jax.random.split(key, 4)
    bound1 = 1.0 / (IN_FEATURES ** 0.5)
    w1 = jax.random.uniform(k1, (HIDDEN, IN_FEATURES), jnp.float32, -bound1, bound1)
    b1 = jax.random.uniform(k2, (HIDDEN,), jnp.float32, -bound1, bound1)
    bound2 = 1.0 / (HIDDEN ** 0.5)
    w2 = jax.random.uniform(k3, (OUT_FEATURES, HIDDEN), jnp.float32, -bound2, bound2)
    b2 = jax.random.uniform(k4, (OUT_FEATURES,), jnp.float32, -bound2, bound2)
    return (
        w1.T,                         # (5184, 128)
        b1.reshape(1, HIDDEN),        # (1, 128)
        w2.reshape(1, HIDDEN),        # (1, 128)  -- second-layer weight as a row
        b2.reshape(1, OUT_FEATURES),  # (1, 1)
    )


def _reference(x, w1_t, b1, w2_row, b2):
    # Un-folded two-layer reference (the original module), at highest XLA precision
    # so it is an accurate baseline for the folded kernel.
    l1 = jnp.dot(x, w1_t, precision=_HP) + b1
    return jnp.dot(l1, w2_row.T, precision=_HP) + b2


if __name__ == "__main__":
    key = jax.random.PRNGKey(0)
    k_x, k_x2, k_p = jax.random.split(key, 3)
    w1_t, b1, w2_row, b2 = init_params(k_p)

    # Small batch: single tile.
    B = 8
    x = jax.random.normal(k_x, (B, IN_FEATURES), jnp.float32)
    out = jax.block_until_ready(linear_model(x, w1_t, b1, w2_row, b2))
    ref = _reference(x, w1_t, b1, w2_row, b2)
    assert out.shape == (B, OUT_FEATURES)
    assert jnp.allclose(out, ref, atol=1e-3, rtol=1e-3)

    # Batch not a multiple of 8 — exercises the >=2-tile split and tail padding.
    B2 = 13
    x2 = jax.random.normal(k_x2, (B2, IN_FEATURES), jnp.float32)
    out2 = jax.block_until_ready(linear_model(x2, w1_t, b1, w2_row, b2))
    ref2 = _reference(x2, w1_t, b1, w2_row, b2)
    assert out2.shape == (B2, OUT_FEATURES)
    assert jnp.allclose(out2, ref2, atol=1e-3, rtol=1e-3)

    print("KERNEL_OK")
</pallas_src>

<mosaic_0001>
module attributes {stable_mosaic.version = 11 : i64} {
  func.func @linear_model_kernel(%arg0: i32, %arg1: memref<8x5184xf32, #tpu.memory_space<vmem>>, %arg2: memref<1x5184xf32, #tpu.memory_space<vmem>>, %arg3: memref<1x1xf32, #tpu.memory_space<vmem>>, %arg4: memref<8x1xf32, #tpu.memory_space<vmem>>) attributes {dimension_semantics = [#tpu.dimension_semantics<parallel>], iteration_bounds = array<i64: 1>, scalar_prefetch = 0 : i64, scratch_operands = 0 : i64, tpu.core_type = #tpu.core_type<tc>, window_params = [{transform_indices = @transform_0, window_bounds = array<i64: 8, 5184>}, {pipeline_mode = #tpu.pipeline_mode<synchronous>, transform_indices = @transform_1, window_bounds = array<i64: 1, 5184>}, {pipeline_mode = #tpu.pipeline_mode<synchronous>, transform_indices = @transform_2, window_bounds = array<i64: 1, 1>}, {transform_indices = @transform_3, window_bounds = array<i64: 8, 1>}]} {
    %c0 = arith.constant 0 : index
    %c0_0 = arith.constant 0 : index
    %0 = vector.load %arg1[%c0, %c0_0] : memref<8x5184xf32, #tpu.memory_space<vmem>>, vector<8x5184xf32>
    %c0_1 = arith.constant 0 : index
    %c0_2 = arith.constant 0 : index
    %1 = vector.load %arg2[%c0_1, %c0_2] : memref<1x5184xf32, #tpu.memory_space<vmem>>, vector<1x5184xf32>
    %2 = vector.broadcast %1 : vector<1x5184xf32> to vector<8x5184xf32>
    %3 = arith.mulf %0, %2 : vector<8x5184xf32>
    %cst = arith.constant dense<0.000000e+00> : vector<8xf32>
    %4 = vector.multi_reduction <add>, %3, %cst [1] : vector<8x5184xf32> to vector<8xf32>
    %5 = vector.shape_cast %4 : vector<8xf32> to vector<8x1xf32>
    %c0_3 = arith.constant 0 : index
    %c0_4 = arith.constant 0 : index
    %6 = vector.load %arg3[%c0_3, %c0_4] : memref<1x1xf32, #tpu.memory_space<vmem>>, vector<1x1xf32>
    %7 = vector.broadcast %6 : vector<1x1xf32> to vector<8x1xf32>
    %8 = arith.addf %5, %7 : vector<8x1xf32>
    %c0_5 = arith.constant 0 : index
    %c0_6 = arith.constant 0 : index
    %9 = vector.load %arg4[%c0_5, %c0_6] : memref<8x1xf32, #tpu.memory_space<vmem>>, vector<8x1xf32>
    tpu.vector_store %arg4[%c0_5, %c0_6], %8 {strides = array<i32>} : memref<8x1xf32, #tpu.memory_space<vmem>>, vector<8x1xf32>,
    return
  }
  func.func @transform_0(%arg0: i32) -> (i32, i32) {
    %c0_i32 = arith.constant 0 : i32
    %c0_i32_0 = arith.constant 0 : i32
    return %arg0, %c0_i32 : i32, i32
  }
  func.func @transform_1(%arg0: i32) -> (i32, i32) {
    %c0_i32 = arith.constant 0 : i32
    %c0_i32_0 = arith.constant 0 : i32
    %c0_i32_1 = arith.constant 0 : i32
    return %c0_i32, %c0_i32_0 : i32, i32
  }
  func.func @transform_2(%arg0: i32) -> (i32, i32) {
    %c0_i32 = arith.constant 0 : i32
    %c0_i32_0 = arith.constant 0 : i32
    %c0_i32_1 = arith.constant 0 : i32
    return %c0_i32, %c0_i32_0 : i32, i32
  }
  func.func @transform_3(%arg0: i32) -> (i32, i32) {
    %c0_i32 = arith.constant 0 : i32
    %c0_i32_0 = arith.constant 0 : i32
    return %arg0, %c0_i32 : i32, i32
  }
}

</mosaic_0001>

<llo_original>
// kernel: tpu_custom_call.1
$region0: #{tpu_custom_call.1}
  #allocation0 [shape = 'u32[]', space=smem, size = 0x4, offset = 0x4, fixed_abs, tag = 'smem constant byte address 0x4 - core index']
  #allocation1 [shape = 'u32[144,128]{1,0:T(1,128)}', space=vmem, size = 0x12000, scoped, tag = 'internal scratch']
  #allocation2 [shape = 'f32[1,1]{1,0:T(1,128)S(1)}', space=vmem, size = 0x200, scoped, tag = 'scoped memory for tpu_custom_call.1']
  %s0 = inlined_call_operand.hbm [shape: f32[8,5184], index: 0, kind: input, shape index: {}]
  %s1 = inlined_call_operand.hbm [shape: f32[1,5184], index: 1, kind: input, shape index: {}]
  %s2 = inlined_call_operand.<no memory space> [shape: f32[1,1], index: 2, kind: input, shape index: {}]
  %s3 = inlined_call_operand.vmem [shape: f32[8,1], index: 3, kind: output, shape index: {}]
  %s4 = sld [smem:[#allocation0]]
  $region30: #{tpu_custom_call.1} parent=0
    _
  %s6 = ssub.s32 1, %s4
  %s7 = scalar_select 0, %s6, %s4
  %v8 = vstv %s2
  %9 = vst [vmem:[#allocation2] sm:$0x1] %v8
  $region1: #{tpu_custom_call.1} parent=0
    #allocation3 [shape = 'u8[167936]{0}', space=vmem, size = 0x29000, scoped, tag = 'input window, operand 0, single buffered']
    #allocation4 [shape = 's32[1]{0}', space=sflag, size = 0x4, scoped, tag = 'scoped memory for tpu_custom_call.1']
    #allocation5 [shape = 'u8[20992]{0}', space=vmem, size = 0x5400, scoped, tag = 'input window, operand 1, single buffered']
    #allocation6 [shape = 's32[1]{0}', space=sflag, size = 0x4, scoped, tag = 'scoped memory for tpu_custom_call.1']
    %10 = vsyncpa [#allocation4], 0
    %11 = vsyncpa [#allocation6], 0
    // Predicated region
    $region2: #{tpu_custom_call.1} parent=1 // pred_check
      _
    $region3: #{tpu_custom_call.1} parent=1 // pred_check_branch
      %13 = sbr.rel (0) target = $region5
    $region4: #{tpu_custom_call.1} parent=1 // pred_region
      %s15 = ssub.s32 5248, 5248
      %16 = vsyncadd [#allocation4], %s15
      %s18 = sshll.u32 [#allocation3], 4
      %s19 = int_to_ptr.vmem [resolvable:$true] %s18
      %21 = dma.hbm_to_vmem [thread:$0]  %s0, 5248, %s19, [#allocation4]
    $region5: #{tpu_custom_call.1} parent=1 // pred_fallthru
      _
    // Predicated region
    $region6: #{tpu_custom_call.1} parent=1 // pred_check
      _
    $region7: #{tpu_custom_call.1} parent=1 // pred_check_branch
      %23 = sbr.rel (0) target = $region9
    $region8: #{tpu_custom_call.1} parent=1 // pred_region
      %s25 = ssub.s32 656, 656
      %26 = vsyncadd [#allocation6], %s25
      %s28 = sshll.u32 [#allocation5], 4
      %s29 = int_to_ptr.vmem [resolvable:$true] %s28
      %31 = dma.hbm_to_vmem [thread:$0]  %s1, 656, %s29, [#allocation6]
    $region9: #{tpu_custom_call.1} parent=1 // pred_fallthru
      _
    // Predicated region
    $region10: #{tpu_custom_call.1} parent=1 // pred_check
      _
    $region11: #{tpu_custom_call.1} parent=1 // pred_check_branch
      %33 = sbr.rel (0) target = $region13
    $region12: #{tpu_custom_call.1} parent=1 // pred_region
      _
    $region13: #{tpu_custom_call.1} parent=1 // pred_fallthru
      _
    // Predicated region
    $region14: #{tpu_custom_call.1} parent=1 // pred_check
      _
    $region15: #{tpu_custom_call.1} parent=1 // pred_check_branch
      %35 = sbr.rel (0) target = $region17
    $region16: #{tpu_custom_call.1} parent=1 // pred_region
      %36 = dma.done [#allocation4], 5248
    $region17: #{tpu_custom_call.1} parent=1 // pred_fallthru
      _
    // Predicated region
    $region18: #{tpu_custom_call.1} parent=1 // pred_check
      _
    $region19: #{tpu_custom_call.1} parent=1 // pred_check_branch
      %38 = sbr.rel (0) target = $region21
    $region20: #{tpu_custom_call.1} parent=1 // pred_region
      %39 = dma.done [#allocation6], 656
    $region21: #{tpu_custom_call.1} parent=1 // pred_fallthru
      _
    %v40 = vld [vmem:[#allocation3] sm:$0xff]
    %v41 = vld [vmem:[#allocation3 + $0x8] sm:$0xff]
    %v42 = vld [vmem:[#allocation3 + $0x10] sm:$0xff]
    %v43 = vld [vmem:[#allocation3 + $0x18] sm:$0xff]
    %v44 = vld [vmem:[#allocation3 + $0x20] sm:$0xff]
    %v45 = vld [vmem:[#allocation3 + $0x28] sm:$0xff]
    %v46 = vld [vmem:[#allocation3 + $0x30] sm:$0xff]
    %v47 = vld [vmem:[#allocation3 + $0x38] sm:$0xff]
    %v48 = vld [vmem:[#allocation3 + $0x40] sm:$0xff]
    %v49 = vld [vmem:[#allocation3 + $0x48] sm:$0xff]
    %v50 = vld [vmem:[#allocation3 + $0x50] sm:$0xff]
    %v51 = vld [vmem:[#allocation3 + $0x58] sm:$0xff]
    %v52 = vld [vmem:[#allocation3 + $0x60] sm:$0xff]
    %v53 = vld [vmem:[#allocation3 + $0x68] sm:$0xff]
    %v54 = vld [vmem:[#allocation3 + $0x70] sm:$0xff]
    %v55 = vld [vmem:[#allocation3 + $0x78] sm:$0xff]
    %v56 = vld [vmem:[#allocation3 + $0x80] sm:$0xff]
    %v57 = vld [vmem:[#allocation3 + $0x88] sm:$0xff]
    %v58 = vld [vmem:[#allocation3 + $0x90] sm:$0xff]
    %v59 = vld [vmem:[#allocation3 + $0x98] sm:$0xff]
    %v60 = vld [vmem:[#allocation3 + $0xa0] sm:$0xff]
    %v61 = vld [vmem:[#allocation3 + $0xa8] sm:$0xff]
    %v62 = vld [vmem:[#allocation3 + $0xb0] sm:$0xff]
    %v63 = vld [vmem:[#allocation3 + $0xb8] sm:$0xff]
    %v64 = vld [vmem:[#allocation3 + $0xc0] sm:$0xff]
    %v65 = vld [vmem:[#allocation3 + $0xc8] sm:$0xff]
    %v66 = vld [vmem:[#allocation3 + $0xd0] sm:$0xff]
    %v67 = vld [vmem:[#allocation3 + $0xd8] sm:$0xff]
    %v68 = vld [vmem:[#allocation3 + $0xe0] sm:$0xff]
    %v69 = vld [vmem:[#allocation3 + $0xe8] sm:$0xff]
    %v70 = vld [vmem:[#allocation3 + $0xf0] sm:$0xff]
    %v71 = vld [vmem:[#allocation3 + $0xf8] sm:$0xff]
    %v72 = vld [vmem:[#allocation3 + $0x100] sm:$0xff]
    %v73 = vld [vmem:[#allocation3 + $0x108] sm:$0xff]
    %v74 = vld [vmem:[#allocation3 + $0x110] sm:$0xff]
    %v75 = vld [vmem:[#allocation3 + $0x118] sm:$0xff]
    %v76 = vld [vmem:[#allocation3 + $0x120] sm:$0xff]
    %v77 = vld [vmem:[#allocation3 + $0x128] sm:$0xff]
    %v78 = vld [vmem:[#allocation3 + $0x130] sm:$0xff]
    %v79 = vld [vmem:[#allocation3 + $0x138] sm:$0xff]
    %v80 = vld [vmem:[#allocation3 + $0x140] sm:$0xff]
    %v81 = vld [vmem:[#allocation5] sm:$0xff]
    %v82 = vld [vmem:[#allocation5 + $0x8] sm:$0xff]
    %v83 = vld [vmem:[#allocation5 + $0x10] sm:$0xff]
    %v84 = vld [vmem:[#allocation5 + $0x18] sm:$0xff]
    %v85 = vld [vmem:[#allocation5 + $0x20] sm:$0xff]
    %v86 = vld [vmem:[#allocation5 + $0x28] sm:$0x1]
    %v93 = vlaneseq
    %v94 = vshrl.u32 %v93, 7
    %v95 = vsub.s32 0, %v94
    %v96 = vrot.slane %v81, %v95
    %v97 = vlaneseq
    %v98 = vshrl.u32 %v97, 7
    %v99 = vsub.s32 1, %v98
    %v100 = vrot.slane %v81, %v99
    %v101 = vlaneseq
    %v102 = vshrl.u32 %v101, 7
    %v103 = vsub.s32 2, %v102
    %v104 = vrot.slane %v81, %v103
    %v105 = vlaneseq
    %v106 = vshrl.u32 %v105, 7
    %v107 = vsub.s32 3, %v106
    %v108 = vrot.slane %v81, %v107
    %v109 = vlaneseq
    %v110 = vshrl.u32 %v109, 7
    %v111 = vsub.s32 4, %v110
    %v112 = vrot.slane %v81, %v111
    %v113 = vlaneseq
    %v114 = vshrl.u32 %v113, 7
    %v115 = vsub.s32 5, %v114
    %v116 = vrot.slane %v81, %v115
    %v117 = vlaneseq
    %v118 = vshrl.u32 %v117, 7
    %v119 = vsub.s32 6, %v118
    %v120 = vrot.slane %v81, %v119
    %v121 = vlaneseq
    %v122 = vshrl.u32 %v121, 7
    %v123 = vsub.s32 7, %v122
    %v124 = vrot.slane %v81, %v123
    %v125 = vlaneseq
    %v126 = vshrl.u32 %v125, 7
    %v127 = vsub.s32 0, %v126
    %v128 = vrot.slane %v82, %v127
    %v129 = vlaneseq
    %v130 = vshrl.u32 %v129, 7
    %v131 = vsub.s32 1, %v130
    %v132 = vrot.slane %v82, %v131
    %v133 = vlaneseq
    %v134 = vshrl.u32 %v133, 7
    %v135 = vsub.s32 2, %v134
    %v136 = vrot.slane %v82, %v135
    %v137 = vlaneseq
    %v138 = vshrl.u32 %v137, 7
    %v139 = vsub.s32 3, %v138
    %v140 = vrot.slane %v82, %v139
    %v141 = vlaneseq
    %v142 = vshrl.u32 %v141, 7
    %v143 = vsub.s32 4, %v142
    %v144 = vrot.slane %v82, %v143
    %v145 = vlaneseq
    %v146 = vshrl.u32 %v145, 7
    %v147 = vsub.s32 5, %v146
    %v148 = vrot.slane %v82, %v147
    %v149 = vlaneseq
    %v150 = vshrl.u32 %v149, 7
    %v151 = vsub.s32 6, %v150
    %v152 = vrot.slane %v82, %v151
    %v153 = vlaneseq
    %v154 = vshrl.u32 %v153, 7
    %v155 = vsub.s32 7, %v154
    %v156 = vrot.slane %v82, %v155
    %v157 = vlaneseq
    %v158 = vshrl.u32 %v157, 7
    %v159 = vsub.s32 0, %v158
    %v160 = vrot.slane %v83, %v159
    %v161 = vlaneseq
    %v162 = vshrl.u32 %v161, 7
    %v163 = vsub.s32 1, %v162
    %v164 = vrot.slane %v83, %v163
    %v165 = vlaneseq
    %v166 = vshrl.u32 %v165, 7
    %v167 = vsub.s32 2, %v166
    %v168 = vrot.slane %v83, %v167
    %v169 = vlaneseq
    %v170 = vshrl.u32 %v169, 7
    %v171 = vsub.s32 3, %v170
    %v172 = vrot.slane %v83, %v171
    %v173 = vlaneseq
    %v174 = vshrl.u32 %v173, 7
    %v175 = vsub.s32 4, %v174
    %v176 = vrot.slane %v83, %v175
    %v177 = vlaneseq
    %v178 = vshrl.u32 %v177, 7
    %v179 = vsub.s32 5, %v178
    %v180 = vrot.slane %v83, %v179
    %v181 = vlaneseq
    %v182 = vshrl.u32 %v181, 7
    %v183 = vsub.s32 6, %v182
    %v184 = vrot.slane %v83, %v183
    %v185 = vlaneseq
    %v186 = vshrl.u32 %v185, 7
    %v187 = vsub.s32 7, %v186
    %v188 = vrot.slane %v83, %v187
    %v189 = vlaneseq
    %v190 = vshrl.u32 %v189, 7
    %v191 = vsub.s32 0, %v190
    %v192 = vrot.slane %v84, %v191
    %v193 = vlaneseq
    %v194 = vshrl.u32 %v193, 7
    %v195 = vsub.s32 1, %v194
    %v196 = vrot.slane %v84, %v195
    %v197 = vlaneseq
    %v198 = vshrl.u32 %v197, 7
    %v199 = vsub.s32 2, %v198
    %v200 = vrot.slane %v84, %v199
    %v201 = vlaneseq
    %v202 = vshrl.u32 %v201, 7
    %v203 = vsub.s32 3, %v202
    %v204 = vrot.slane %v84, %v203
    %v205 = vlaneseq
    %v206 = vshrl.u32 %v205, 7
    %v207 = vsub.s32 4, %v206
    %v208 = vrot.slane %v84, %v207
    %v209 = vlaneseq
    %v210 = vshrl.u32 %v209, 7
    %v211 = vsub.s32 5, %v210
    %v212 = vrot.slane %v84, %v211
    %v213 = vlaneseq
    %v214 = vshrl.u32 %v213, 7
    %v215 = vsub.s32 6, %v214
    %v216 = vrot.slane %v84, %v215
    %v217 = vlaneseq
    %v218 = vshrl.u32 %v217, 7
    %v219 = vsub.s32 7, %v218
    %v220 = vrot.slane %v84, %v219
    %v221 = vlaneseq
    %v222 = vshrl.u32 %v221, 7
    %v223 = vsub.s32 0, %v222
    %v224 = vrot.slane %v85, %v223
    %v225 = vlaneseq
    %v226 = vshrl.u32 %v225, 7
    %v227 = vsub.s32 1, %v226
    %v228 = vrot.slane %v85, %v227
    %v229 = vlaneseq
    %v230 = vshrl.u32 %v229, 7
    %v231 = vsub.s32 2, %v230
    %v232 = vrot.slane %v85, %v231
    %v233 = vlaneseq
    %v234 = vshrl.u32 %v233, 7
    %v235 = vsub.s32 3, %v234
    %v236 = vrot.slane %v85, %v235
    %v237 = vlaneseq
    %v238 = vshrl.u32 %v237, 7
    %v239 = vsub.s32 4, %v238
    %v240 = vrot.slane %v85, %v239
    %v241 = vlaneseq
    %v242 = vshrl.u32 %v241, 7
    %v243 = vsub.s32 5, %v242
    %v244 = vrot.slane %v85, %v243
    %v245 = vlaneseq
    %v246 = vshrl.u32 %v245, 7
    %v247 = vsub.s32 6, %v246
    %v248 = vrot.slane %v85, %v247
    %v249 = vlaneseq
    %v250 = vshrl.u32 %v249, 7
    %v251 = vsub.s32 7, %v250
    %v252 = vrot.slane %v85, %v251
    %v253 = vlaneseq
    %v254 = vshrl.u32 %v253, 7
    %v255 = vsub.s32 0, %v254
    %v256 = vrot.slane %v86, %v255
    %v298 = vmul.f32 %v40, %v96
    %v299 = vmul.f32 %v41, %v100
    %v300 = vmul.f32 %v42, %v104
    %v301 = vmul.f32 %v43, %v108
    %v302 = vmul.f32 %v44, %v112
    %v303 = vmul.f32 %v45, %v116
    %v304 = vmul.f32 %v46, %v120
    %v305 = vmul.f32 %v47, %v124
    %v306 = vmul.f32 %v48, %v128
    %v307 = vmul.f32 %v49, %v132
    %v308 = vmul.f32 %v50, %v136
    %v309 = vmul.f32 %v51, %v140
    %v310 = vmul.f32 %v52, %v144
    %v311 = vmul.f32 %v53, %v148
    %v312 = vmul.f32 %v54, %v152
    %v313 = vmul.f32 %v55, %v156
    %v314 = vmul.f32 %v56, %v160
    %v315 = vmul.f32 %v57, %v164
    %v316 = vmul.f32 %v58, %v168
    %v317 = vmul.f32 %v59, %v172
    %v318 = vmul.f32 %v60, %v176
    %v319 = vmul.f32 %v61, %v180
    %v320 = vmul.f32 %v62, %v184
    %v321 = vmul.f32 %v63, %v188
    %v322 = vmul.f32 %v64, %v192
    %v323 = vmul.f32 %v65, %v196
    %v324 = vmul.f32 %v66, %v200
    %v325 = vmul.f32 %v67, %v204
    %v326 = vmul.f32 %v68, %v208
    %v327 = vmul.f32 %v69, %v212
    %v328 = vmul.f32 %v70, %v216
    %v329 = vmul.f32 %v71, %v220
    %v330 = vmul.f32 %v72, %v224
    %v331 = vmul.f32 %v73, %v228
    %v332 = vmul.f32 %v74, %v232
    %v333 = vmul.f32 %v75, %v236
    %v334 = vmul.f32 %v76, %v240
    %v335 = vmul.f32 %v77, %v244
    %v336 = vmul.f32 %v78, %v248
    %v337 = vmul.f32 %v79, %v252
    %v338 = vmul.f32 %v80, %v256
    %v339 = vadd.f32 %v298, %v299
    %v340 = vadd.f32 %v339, %v300
    %v341 = vadd.f32 %v340, %v301
    %v342 = vadd.f32 %v341, %v302
    %v343 = vadd.f32 %v342, %v303
    %v344 = vadd.f32 %v343, %v304
    %v345 = vadd.f32 %v344, %v305
    %v346 = vadd.f32 %v345, %v306
    %v347 = vadd.f32 %v346, %v307
    %v348 = vadd.f32 %v347, %v308
    %v349 = vadd.f32 %v348, %v309
    %v350 = vadd.f32 %v349, %v310
    %v351 = vadd.f32 %v350, %v311
    %v352 = vadd.f32 %v351, %v312
    %v353 = vadd.f32 %v352, %v313
    %v354 = vadd.f32 %v353, %v314
    %v355 = vadd.f32 %v354, %v315
    %v356 = vadd.f32 %v355, %v316
    %v357 = vadd.f32 %v356, %v317
    %v358 = vadd.f32 %v357, %v318
    %v359 = vadd.f32 %v358, %v319
    %v360 = vadd.f32 %v359, %v320
    %v361 = vadd.f32 %v360, %v321
    %v362 = vadd.f32 %v361, %v322
    %v363 = vadd.f32 %v362, %v323
    %v364 = vadd.f32 %v363, %v324
    %v365 = vadd.f32 %v364, %v325
    %v366 = vadd.f32 %v365, %v326
    %v367 = vadd.f32 %v366, %v327
    %v368 = vadd.f32 %v367, %v328
    %v369 = vadd.f32 %v368, %v329
    %v370 = vadd.f32 %v369, %v330
    %v371 = vadd.f32 %v370, %v331
    %v372 = vadd.f32 %v371, %v332
    %v373 = vadd.f32 %v372, %v333
    %v374 = vadd.f32 %v373, %v334
    %v375 = vadd.f32 %v374, %v335
    %v376 = vadd.f32 %v375, %v336
    %v377 = vadd.f32 %v376, %v337
    %vm378 = vcmask 523264
    %v379 = vsel %vm378, %v338, 0.0
    %v380 = vadd.f32 %v377, %v379
    %381 = vadd.xlane.f32.xlu0 %v380
    %v382 = vpop.xlane.xlu0 %381
    %v383 = vld [vmem:[#allocation2] sm:$0x1]
    %v385 = vlaneseq
    %v386 = vshrl.u32 %v385, 7
    %v387 = vsub.s32 0, %v386
    %v388 = vrot.slane %v383, %v387
    %v390 = vadd.f32 %v382, %v388
    %vm391 = vcmask 7168
    %392 = vst.msk [vmem:[%s3] sm:$0xff] %vm391, %v390
    // Predicated region
    $region22: #{tpu_custom_call.1} parent=1 // pred_check
      _
    $region23: #{tpu_custom_call.1} parent=1 // pred_check_branch
      %394 = sbr.rel (0) target = $region25
    $region24: #{tpu_custom_call.1} parent=1 // pred_region
      _
    $region25: #{tpu_custom_call.1} parent=1 // pred_fallthru
      _
    // Predicated region
    $region26: #{tpu_custom_call.1} parent=1 // pred_check
      _
    $region27: #{tpu_custom_call.1} parent=1 // pred_check_branch
      %396 = sbr.rel (0) target = $region29
    $region28: #{tpu_custom_call.1} parent=1 // pred_region
      _
    $region29: #{tpu_custom_call.1} parent=1 // pred_fallthru
      _
    %397 = vsyncpa [#allocation4], 1
    %398 = vsyncpa [#allocation6], 1

</llo_original>
